<compile_context>
chip_gen: v7x
topology: tpu7x:2x2x1
jax: 0.10.0
libtpu: 0.0.40
codegen_flags: <defaults>
</compile_context>

<pallas_src>
import jax
import jax.numpy as jnp
from jax.experimental import pallas as pl
from jax.experimental.pallas import tpu as pltpu


def attn_decoder_kernel(
    tok_ref,                      # SMEM (T,) int32  scalar-prefetch token ids
    emb_ref,                      # VMEM (1,1,H) bf16 gathered embedding row
    hid_ref,                      # VMEM (1,H)  f32  initial hidden state
    enc_ref,                      # VMEM (L,H)  bf16 encoder outputs
    wattn_ref, battn_ref,         # (2H,L) bf16, (1,L) f32
    wcomb_ref, bcomb_ref,         # (2H,H) bf16, (1,H) f32
    wi_ref, bi_ref,               # (H,3H) bf16, (1,3H) f32  [b_ir+b_hr | b_iz+b_hz | b_in]
    wh_ref, bh_ref,               # (H,3H) bf16, (1,3H) f32  [0 | 0 | b_hn]
    wout_ref, bout_ref,           # (H,V) bf16, (1,V) f32
    logp_ref, attnw_ref, newh_ref,  # outputs (1,1,V), (1,1,L), (1,H)
    h_scr,                        # VMEM scratch (1,H) f32 -- hidden carried across steps
):
    f32 = jnp.float32
    bf16 = jnp.bfloat16
    H = hid_ref.shape[-1]
    step = pl.program_id(0)

    @pl.when(step == 0)
    def _():
        h_scr[...] = hid_ref[...]

    embedded = emb_ref[0]                 # (1,H) bf16 embedding lookup (dropout = identity)
    hidden = h_scr[...]                   # (1,H) f32
    hidden_bf = hidden.astype(bf16)

    # attn_weights = softmax(Linear_{2H->L}(cat(embedded, hidden)))  -- split matmul
    attn_logits = (
        jnp.dot(embedded, wattn_ref[0:H, :], preferred_element_type=f32)
        + jnp.dot(hidden_bf, wattn_ref[H:2 * H, :], preferred_element_type=f32)
        + battn_ref[...]
    )
    m = jnp.max(attn_logits, axis=1, keepdims=True)
    e = jnp.exp(attn_logits - m)
    inv = pl.reciprocal(jnp.sum(e, axis=1, keepdims=True), approx=True)
    attn_w = e * inv
    attnw_ref[0] = attn_w

    # attn_applied = attn_weights @ encoder_output
    attn_applied = jnp.dot(attn_w.astype(bf16), enc_ref[...], preferred_element_type=f32)

    # relu(atten_combine(cat(embedded, attn_applied)))  -- split matmul
    comb = (
        jnp.dot(embedded, wcomb_ref[0:H, :], preferred_element_type=f32)
        + jnp.dot(attn_applied.astype(bf16), wcomb_ref[H:2 * H, :],
                  preferred_element_type=f32)
        + bcomb_ref[...]
    )
    x = jnp.maximum(comb, 0.0)

    # single-step GRU cell, gates fused into one (1,3H) slab each (PyTorch order r|z|n)
    gi = jnp.dot(x.astype(bf16), wi_ref[...], preferred_element_type=f32) + bi_ref[...]
    gh = jnp.dot(hidden_bf, wh_ref[...], preferred_element_type=f32) + bh_ref[...]
    r = jax.nn.sigmoid(gi[:, 0:H] + gh[:, 0:H])
    z = jax.nn.sigmoid(gi[:, H:2 * H] + gh[:, H:2 * H])
    n = jnp.tanh(gi[:, 2 * H:3 * H] + r * gh[:, 2 * H:3 * H])
    h_new = (1.0 - z) * n + z * hidden
    h_scr[...] = h_new
    newh_ref[...] = h_new

    # log_softmax(out(h_new))
    logits = jnp.dot(h_new.astype(bf16), wout_ref[...], preferred_element_type=f32) + bout_ref[...]
    m2 = jnp.max(logits, axis=1, keepdims=True)
    lse = jnp.log(jnp.sum(jnp.exp(logits - m2), axis=1, keepdims=True))
    logp_ref[0] = logits - m2 - lse


def attn_decoder_decode(tokens, hidden, encoder_output, packed):
    """Run T decode steps inside one pallas_call (weights VMEM-resident across steps).

    tokens: (T,) int32 in [0, V); hidden: (1,1,H) f32; encoder_output: (L,H).
    Returns: logp (T,V), final hidden (1,1,H), attn_w (T,L).
    """
    T = int(tokens.shape[0])
    V, _, H = packed["emb3"].shape
    L = encoder_output.shape[0]
    tok = tokens.reshape(T).astype(jnp.int32)
    hid2d = hidden.reshape(1, H).astype(jnp.float32)
    enc = encoder_output.astype(jnp.bfloat16)

    def const(shape):
        return pl.BlockSpec(shape, lambda i, tok_ref, _s=shape: (0,) * len(_s))

    in_specs = [
        pl.BlockSpec((1, 1, H), lambda i, tok_ref: (tok_ref[i], 0, 0)),  # emb row gather
        const((1, H)),                              # hidden (read at step 0 only)
        const((L, H)),                              # encoder output
        const((2 * H, L)), const((1, L)),           # attn
        const((2 * H, H)), const((1, H)),           # atten_combine
        const((H, 3 * H)), const((1, 3 * H)),       # GRU input->hidden
        const((H, 3 * H)), const((1, 3 * H)),       # GRU hidden->hidden
        const((H, V)), const((1, V)),               # out
    ]
    out_specs = (
        pl.BlockSpec((1, 1, V), lambda i, tok_ref: (i, 0, 0)),
        pl.BlockSpec((1, 1, L), lambda i, tok_ref: (i, 0, 0)),
        pl.BlockSpec((1, H), lambda i, tok_ref: (0, 0)),
    )

    grid_spec = pltpu.PrefetchScalarGridSpec(
        num_scalar_prefetch=1,
        grid=(T,),
        in_specs=in_specs,
        out_specs=out_specs,
        scratch_shapes=[pltpu.VMEM((1, H), jnp.float32)],
    )

    logp, attn_w, newh = pl.pallas_call(
        attn_decoder_kernel,
        out_shape=(
            jax.ShapeDtypeStruct((T, 1, V), jnp.float32),
            jax.ShapeDtypeStruct((T, 1, L), jnp.float32),
            jax.ShapeDtypeStruct((1, H), jnp.float32),
        ),
        grid_spec=grid_spec,
        compiler_params=pltpu.CompilerParams(
            dimension_semantics=("arbitrary",)),    # hidden carried step->step: sequential
    )(
        tok, packed["emb3"], hid2d, enc,
        packed["w_attn"], packed["b_attn"],
        packed["w_comb"], packed["b_comb"],
        packed["w_i"], packed["b_i"],
        packed["w_h"], packed["b_h"],
        packed["w_out"], packed["b_out"],
    )
    return logp.reshape(T, V), newh.reshape(1, 1, H), attn_w.reshape(T, L)


def attn_decoder_forward(token, hidden, encoder_output, packed):
    """Module-equivalent single decode step -> (logp (1,V), hidden (1,1,H), attn_w (1,L))."""
    return attn_decoder_decode(token.reshape(1), hidden, encoder_output, packed)


def init_params(key, hidden_size, output_size, max_length):
    H, V, L = hidden_size, output_size, max_length
    ks = jax.random.split(key, 20)
    w = lambda k, shape, s=0.1: s * jax.random.normal(k, shape, dtype=jnp.float32)
    p = {}
    p["emb"] = w(ks[0], (V, H))
    p["w_attn_e"], p["w_attn_h"] = w(ks[1], (H, L)), w(ks[2], (H, L))
    p["b_attn"] = w(ks[3], (1, L))
    p["w_comb_e"], p["w_comb_a"] = w(ks[4], (H, H)), w(ks[5], (H, H))
    p["b_comb"] = w(ks[6], (1, H))
    p["w_ir"], p["w_iz"], p["w_in"] = w(ks[7], (H, H)), w(ks[8], (H, H)), w(ks[9], (H, H))
    p["b_ir"], p["b_iz"], p["b_in"] = w(ks[10], (1, H)), w(ks[11], (1, H)), w(ks[12], (1, H))
    p["w_hr"], p["w_hz"], p["w_hn"] = w(ks[13], (H, H)), w(ks[14], (H, H)), w(ks[15], (H, H))
    p["b_hr"], p["b_hz"], p["b_hn"] = w(ks[16], (1, H)), w(ks[17], (1, H)), w(ks[18], (1, H))
    p["w_out"] = w(ks[19], (H, V))
    p["b_out"] = jnp.zeros((1, V), jnp.float32)
    return p


def pack_params(p):
    """Pack raw f32 params into the bf16 slabs the kernel consumes."""
    bf16 = jnp.bfloat16
    return {
        "emb3": p["emb"].astype(bf16)[:, None, :],                                   # (V,1,H)
        "w_attn": jnp.concatenate([p["w_attn_e"], p["w_attn_h"]], 0).astype(bf16),   # (2H,L)
        "b_attn": p["b_attn"],
        "w_comb": jnp.concatenate([p["w_comb_e"], p["w_comb_a"]], 0).astype(bf16),   # (2H,H)
        "b_comb": p["b_comb"],
        "w_i": jnp.concatenate([p["w_ir"], p["w_iz"], p["w_in"]], 1).astype(bf16),   # (H,3H)
        "b_i": jnp.concatenate(
            [p["b_ir"] + p["b_hr"], p["b_iz"] + p["b_hz"], p["b_in"]], 1),           # (1,3H)
        "w_h": jnp.concatenate([p["w_hr"], p["w_hz"], p["w_hn"]], 1).astype(bf16),   # (H,3H)
        "b_h": jnp.concatenate(
            [jnp.zeros_like(p["b_hr"]), jnp.zeros_like(p["b_hz"]), p["b_hn"]], 1),   # (1,3H)
        "w_out": p["w_out"].astype(bf16),
        "b_out": p["b_out"],
    }


def reference_decode(tokens, hidden, encoder_output, p, *, mm_dtype=jnp.float32):
    """Pure-JAX reference mirroring the PyTorch forward (eval mode), looped over tokens.

    mm_dtype=jnp.bfloat16 mirrors the kernel's bf16 matmul-operand storage exactly.
    """
    def mm(a, b):
        return jnp.dot(a.astype(mm_dtype), b.astype(mm_dtype),
                       preferred_element_type=jnp.float32)

    H = hidden.shape[-1]
    hid = hidden.reshape(1, H).astype(jnp.float32)
    logps, attws = [], []
    for t in tokens.tolist():
        emb = p["emb"][t][None, :]
        attn_logits = mm(emb, p["w_attn_e"]) + mm(hid, p["w_attn_h"]) + p["b_attn"]
        attn_w = jax.nn.softmax(attn_logits, axis=1)
        attn_applied = mm(attn_w, encoder_output)
        x = jax.nn.relu(mm(emb, p["w_comb_e"]) + mm(attn_applied, p["w_comb_a"]) + p["b_comb"])
        r = jax.nn.sigmoid(mm(x, p["w_ir"]) + p["b_ir"] + mm(hid, p["w_hr"]) + p["b_hr"])
        z = jax.nn.sigmoid(mm(x, p["w_iz"]) + p["b_iz"] + mm(hid, p["w_hz"]) + p["b_hz"])
        n = jnp.tanh(mm(x, p["w_in"]) + p["b_in"] + r * (mm(hid, p["w_hn"]) + p["b_hn"]))
        hid = (1.0 - z) * n + z * hid
        logps.append(jax.nn.log_softmax(mm(hid, p["w_out"]) + p["b_out"], axis=1))
        attws.append(attn_w)
    return jnp.concatenate(logps, 0), hid.reshape(1, 1, H), jnp.concatenate(attws, 0)


if __name__ == "__main__":
    HIDDEN, VOCAB, MAXLEN, STEPS = 32, 64, 128, 3   # small shapes consistent with the module

    key = jax.random.PRNGKey(0)
    kp, ke, kt = jax.random.split(key, 3)
    raw = init_params(kp, HIDDEN, VOCAB, MAXLEN)
    packed = pack_params(raw)
    tokens = jax.random.randint(kt, (STEPS,), 0, VOCAB, dtype=jnp.int32)
    hidden0 = jnp.zeros((1, 1, HIDDEN), jnp.float32)                     # initHidden()
    enc = jax.random.normal(ke, (MAXLEN, HIDDEN), dtype=jnp.float32)     # encoder_output

    # Single-step call (exactly the module's forward signature / outputs).
    logp1, h1, aw1 = attn_decoder_forward(tokens[:1], hidden0, enc, packed)
    jax.block_until_ready((logp1, h1, aw1))
    assert logp1.shape == (1, VOCAB) and h1.shape == (1, 1, HIDDEN) and aw1.shape == (1, MAXLEN)

    # Multi-step decode: one pallas_call, weights resident across all STEPS grid steps.
    logp, h_fin, aw = attn_decoder_decode(tokens, hidden0, enc, packed)
    jax.block_until_ready((logp, h_fin, aw))
    assert logp.shape == (STEPS, VOCAB) and h_fin.shape == (1, 1, HIDDEN) and aw.shape == (STEPS, MAXLEN)

    # Tight check vs a reference that mirrors the kernel's bf16 matmul-operand casts.
    m_logp, m_h, m_aw = reference_decode(tokens, hidden0, enc, raw, mm_dtype=jnp.bfloat16)
    m1_logp, m1_h, m1_aw = reference_decode(tokens[:1], hidden0, enc, raw, mm_dtype=jnp.bfloat16)
    tight = dict(atol=5e-3, rtol=5e-3)
    assert jnp.allclose(logp, m_logp, **tight), "multi-step log-probs mismatch (bf16 ref)"
    assert jnp.allclose(h_fin, m_h, **tight), "multi-step hidden mismatch (bf16 ref)"
    assert jnp.allclose(aw, m_aw, **tight), "multi-step attn weights mismatch (bf16 ref)"
    assert jnp.allclose(logp1, m1_logp, **tight), "single-step log-probs mismatch (bf16 ref)"
    assert jnp.allclose(h1, m1_h, **tight), "single-step hidden mismatch (bf16 ref)"
    assert jnp.allclose(aw1, m1_aw, **tight), "single-step attn weights mismatch (bf16 ref)"

    # Loose check vs the pure-f32 reference (PyTorch-equivalent math); slack covers bf16 weights.
    f_logp, f_h, f_aw = reference_decode(tokens, hidden0, enc, raw, mm_dtype=jnp.float32)
    loose = dict(atol=5e-2, rtol=5e-2)
    assert jnp.allclose(logp, f_logp, **loose), "log-probs drift vs f32 reference too large"
    assert jnp.allclose(h_fin, f_h, **loose), "hidden drift vs f32 reference too large"
    assert jnp.allclose(aw, f_aw, **loose), "attn weights drift vs f32 reference too large"

    print("KERNEL_OK")
</pallas_src>

<mosaic_0001>
module attributes {stable_mosaic.version = 11 : i64} {
  func.func @attn_decoder_kernel(%arg0: i32, %arg1: memref<1xi32, #tpu.memory_space<smem>>, %arg2: memref<1x1x32xbf16, #tpu.memory_space<vmem>>, %arg3: memref<1x32xf32, #tpu.memory_space<vmem>>, %arg4: memref<128x32xbf16, #tpu.memory_space<vmem>>, %arg5: memref<64x128xbf16, #tpu.memory_space<vmem>>, %arg6: memref<1x128xf32, #tpu.memory_space<vmem>>, %arg7: memref<64x32xbf16, #tpu.memory_space<vmem>>, %arg8: memref<1x32xf32, #tpu.memory_space<vmem>>, %arg9: memref<32x96xbf16, #tpu.memory_space<vmem>>, %arg10: memref<1x96xf32, #tpu.memory_space<vmem>>, %arg11: memref<32x96xbf16, #tpu.memory_space<vmem>>, %arg12: memref<1x96xf32, #tpu.memory_space<vmem>>, %arg13: memref<32x64xbf16, #tpu.memory_space<vmem>>, %arg14: memref<1x64xf32, #tpu.memory_space<vmem>>, %arg15: memref<1x1x64xf32, #tpu.memory_space<vmem>>, %arg16: memref<1x1x128xf32, #tpu.memory_space<vmem>>, %arg17: memref<1x32xf32, #tpu.memory_space<vmem>>, %arg18: memref<1x32xf32, #tpu.memory_space<vmem>>) attributes {dimension_semantics = [#tpu.dimension_semantics<arbitrary>], iteration_bounds = array<i64: 1>, scalar_prefetch = 1 : i64, scratch_operands = 1 : i64, tpu.core_type = #tpu.core_type<tc>, window_params = [{transform_indices = @transform_0, window_bounds = array<i64: 1, 1, 32>}, {pipeline_mode = #tpu.pipeline_mode<synchronous>, transform_indices = @transform_1, window_bounds = array<i64: 1, 32>}, {pipeline_mode = #tpu.pipeline_mode<synchronous>, transform_indices = @transform_2, window_bounds = array<i64: 128, 32>}, {pipeline_mode = #tpu.pipeline_mode<synchronous>, transform_indices = @transform_3, window_bounds = array<i64: 64, 128>}, {pipeline_mode = #tpu.pipeline_mode<synchronous>, transform_indices = @transform_4, window_bounds = array<i64: 1, 128>}, {pipeline_mode = #tpu.pipeline_mode<synchronous>, transform_indices = @transform_5, window_bounds = array<i64: 64, 32>}, {pipeline_mode = #tpu.pipeline_mode<synchronous>, transform_indices = @transform_6, window_bounds = array<i64: 1, 32>}, {pipeline_mode = #tpu.pipeline_mode<synchronous>, transform_indices = @transform_7, window_bounds = array<i64: 32, 96>}, {pipeline_mode = #tpu.pipeline_mode<synchronous>, transform_indices = @transform_8, window_bounds = array<i64: 1, 96>}, {pipeline_mode = #tpu.pipeline_mode<synchronous>, transform_indices = @transform_9, window_bounds = array<i64: 32, 96>}, {pipeline_mode = #tpu.pipeline_mode<synchronous>, transform_indices = @transform_10, window_bounds = array<i64: 1, 96>}, {pipeline_mode = #tpu.pipeline_mode<synchronous>, transform_indices = @transform_11, window_bounds = array<i64: 32, 64>}, {pipeline_mode = #tpu.pipeline_mode<synchronous>, transform_indices = @transform_12, window_bounds = array<i64: 1, 64>}, {transform_indices = @transform_13, window_bounds = array<i64: 1, 1, 64>}, {transform_indices = @transform_14, window_bounds = array<i64: 1, 1, 128>}, {pipeline_mode = #tpu.pipeline_mode<synchronous>, transform_indices = @transform_15, window_bounds = array<i64: 1, 32>}]} {
    %c0_i32 = arith.constant 0 : i32
    %0 = arith.cmpi eq, %arg0, %c0_i32 : i32
    %1 = arith.extui %0 : i1 to i32
    %c0_i32_0 = arith.constant 0 : i32
    %2 = arith.cmpi ne, %1, %c0_i32_0 : i32
    scf.if %2 {
      %c0_55 = arith.constant 0 : index
      %c0_56 = arith.constant 0 : index
      %97 = vector.load %arg3[%c0_55, %c0_56] : memref<1x32xf32, #tpu.memory_space<vmem>>, vector<1x32xf32>
      %c0_57 = arith.constant 0 : index
      %c0_58 = arith.constant 0 : index
      %98 = vector.load %arg18[%c0_57, %c0_58] : memref<1x32xf32, #tpu.memory_space<vmem>>, vector<1x32xf32>
      tpu.vector_store %arg18[%c0_57, %c0_58], %97 {strides = array<i32>} : memref<1x32xf32, #tpu.memory_space<vmem>>, vector<1x32xf32>,
    } else {
    }
    %c0 = arith.constant 0 : index
    %c0_1 = arith.constant 0 : index
    %c0_2 = arith.constant 0 : index
    %3 = vector.load %arg2[%c0, %c0_1, %c0_2] : memref<1x1x32xbf16, #tpu.memory_space<vmem>>, vector<1x1x32xbf16>
    %4 = vector.shape_cast %3 : vector<1x1x32xbf16> to vector<1x32xbf16>
    %c0_3 = arith.constant 0 : index
    %c0_4 = arith.constant 0 : index
    %5 = vector.load %arg18[%c0_3, %c0_4] : memref<1x32xf32, #tpu.memory_space<vmem>>, vector<1x32xf32>
    %6 = arith.truncf %5 : vector<1x32xf32> to vector<1x32xbf16>
    %c0_5 = arith.constant 0 : index
    %c0_6 = arith.constant 0 : index
    %7 = vector.load %arg5[%c0_5, %c0_6] : memref<64x128xbf16, #tpu.memory_space<vmem>>, vector<32x128xbf16>
    %cst = arith.constant dense<0.000000e+00> : vector<1x128xf32>
    %8 = tpu.matmul %4, %7, %cst {dimension_numbers = #tpu.dot_dimension_numbers<[1], [0], [0], [1], [0, 0, 1, 1], [], []>} : vector<1x32xbf16>, vector<32x128xbf16>, vector<1x128xf32> -> vector<1x128xf32>
    %c32 = arith.constant 32 : index
    %c0_7 = arith.constant 0 : index
    %9 = vector.load %arg5[%c32, %c0_7] : memref<64x128xbf16, #tpu.memory_space<vmem>>, vector<32x128xbf16>
    %cst_8 = arith.constant dense<0.000000e+00> : vector<1x128xf32>
    %10 = tpu.matmul %6, %9, %cst_8 {dimension_numbers = #tpu.dot_dimension_numbers<[1], [0], [0], [1], [0, 0, 1, 1], [], []>} : vector<1x32xbf16>, vector<32x128xbf16>, vector<1x128xf32> -> vector<1x128xf32>
    %11 = arith.addf %8, %10 : vector<1x128xf32>
    %c0_9 = arith.constant 0 : index
    %c0_10 = arith.constant 0 : index
    %12 = vector.load %arg6[%c0_9, %c0_10] : memref<1x128xf32, #tpu.memory_space<vmem>>, vector<1x128xf32>
    %13 = arith.addf %11, %12 : vector<1x128xf32>
    %cst_11 = arith.constant dense<0xFF800000> : vector<1xf32>
    %14 = vector.multi_reduction <maximumf>, %13, %cst_11 [1] : vector<1x128xf32> to vector<1xf32>
    %15 = vector.shape_cast %14 : vector<1xf32> to vector<1x1xf32>
    %16 = vector.broadcast %15 : vector<1x1xf32> to vector<1x128xf32>
    %17 = arith.subf %13, %16 : vector<1x128xf32>
    %18 = math.exp %17 : vector<1x128xf32>
    %cst_12 = arith.constant dense<0.000000e+00> : vector<1xf32>
    %19 = vector.multi_reduction <add>, %18, %cst_12 [1] : vector<1x128xf32> to vector<1xf32>
    %20 = vector.shape_cast %19 : vector<1xf32> to vector<1x1xf32>
    %21 = tpu.reciprocal %20 {approx = true} : vector<1x1xf32> -> vector<1x1xf32>
    %22 = vector.broadcast %21 : vector<1x1xf32> to vector<1x128xf32>
    %23 = arith.mulf %18, %22 : vector<1x128xf32>
    %c0_13 = arith.constant 0 : index
    %c0_14 = arith.constant 0 : index
    %c0_15 = arith.constant 0 : index
    %24 = vector.load %arg16[%c0_13, %c0_14, %c0_15] : memref<1x1x128xf32, #tpu.memory_space<vmem>>, vector<1x1x128xf32>
    %25 = vector.shape_cast %24 : vector<1x1x128xf32> to vector<1x128xf32>
    %26 = vector.shape_cast %23 : vector<1x128xf32> to vector<1x1x128xf32>
    tpu.vector_store %arg16[%c0_13, %c0_14, %c0_15], %26 {strides = array<i32>} : memref<1x1x128xf32, #tpu.memory_space<vmem>>, vector<1x1x128xf32>,
    %27 = arith.truncf %23 : vector<1x128xf32> to vector<1x128xbf16>
    %c0_16 = arith.constant 0 : index
    %c0_17 = arith.constant 0 : index
    %28 = vector.load %arg4[%c0_16, %c0_17] : memref<128x32xbf16, #tpu.memory_space<vmem>>, vector<128x32xbf16>
    %cst_18 = arith.constant dense<0.000000e+00> : vector<1x32xf32>
    %29 = tpu.matmul %27, %28, %cst_18 {dimension_numbers = #tpu.dot_dimension_numbers<[1], [0], [0], [1], [0, 0, 1, 1], [], []>} : vector<1x128xbf16>, vector<128x32xbf16>, vector<1x32xf32> -> vector<1x32xf32>
    %c0_19 = arith.constant 0 : index
    %c0_20 = arith.constant 0 : index
    %30 = vector.load %arg7[%c0_19, %c0_20] : memref<64x32xbf16, #tpu.memory_space<vmem>>, vector<32x32xbf16>
    %cst_21 = arith.constant dense<0.000000e+00> : vector<1x32xf32>
    %31 = tpu.matmul %4, %30, %cst_21 {dimension_numbers = #tpu.dot_dimension_numbers<[1], [0], [0], [1], [0, 0, 1, 1], [], []>} : vector<1x32xbf16>, vector<32x32xbf16>, vector<1x32xf32> -> vector<1x32xf32>
    %32 = arith.truncf %29 : vector<1x32xf32> to vector<1x32xbf16>
    %c32_22 = arith.constant 32 : index
    %c0_23 = arith.constant 0 : index
    %33 = vector.load %arg7[%c32_22, %c0_23] : memref<64x32xbf16, #tpu.memory_space<vmem>>, vector<32x32xbf16>
    %cst_24 = arith.constant dense<0.000000e+00> : vector<1x32xf32>
    %34 = tpu.matmul %32, %33, %cst_24 {dimension_numbers = #tpu.dot_dimension_numbers<[1], [0], [0], [1], [0, 0, 1, 1], [], []>} : vector<1x32xbf16>, vector<32x32xbf16>, vector<1x32xf32> -> vector<1x32xf32>
    %35 = arith.addf %31, %34 : vector<1x32xf32>
    %c0_25 = arith.constant 0 : index
    %c0_26 = arith.constant 0 : index
    %36 = vector.load %arg8[%c0_25, %c0_26] : memref<1x32xf32, #tpu.memory_space<vmem>>, vector<1x32xf32>
    %37 = arith.addf %35, %36 : vector<1x32xf32>
    %cst_27 = arith.constant 0.000000e+00 : f32
    %38 = vector.broadcast %cst_27 : f32 to vector<1x32xf32>
    %39 = arith.maximumf %37, %38 : vector<1x32xf32>
    %40 = arith.truncf %39 : vector<1x32xf32> to vector<1x32xbf16>
    %c0_28 = arith.constant 0 : index
    %c0_29 = arith.constant 0 : index
    %41 = vector.load %arg9[%c0_28, %c0_29] : memref<32x96xbf16, #tpu.memory_space<vmem>>, vector<32x96xbf16>
    %cst_30 = arith.constant dense<0.000000e+00> : vector<1x96xf32>
    %42 = tpu.matmul %40, %41, %cst_30 {dimension_numbers = #tpu.dot_dimension_numbers<[1], [0], [0], [1], [0, 0, 1, 1], [], []>} : vector<1x32xbf16>, vector<32x96xbf16>, vector<1x96xf32> -> vector<1x96xf32>
    %c0_31 = arith.constant 0 : index
    %c0_32 = arith.constant 0 : index
    %43 = vector.load %arg10[%c0_31, %c0_32] : memref<1x96xf32, #tpu.memory_space<vmem>>, vector<1x96xf32>
    %44 = arith.addf %42, %43 : vector<1x96xf32>
    %c0_33 = arith.constant 0 : index
    %c0_34 = arith.constant 0 : index
    %45 = vector.load %arg11[%c0_33, %c0_34] : memref<32x96xbf16, #tpu.memory_space<vmem>>, vector<32x96xbf16>
    %cst_35 = arith.constant dense<0.000000e+00> : vector<1x96xf32>
    %46 = tpu.matmul %6, %45, %cst_35 {dimension_numbers = #tpu.dot_dimension_numbers<[1], [0], [0], [1], [0, 0, 1, 1], [], []>} : vector<1x32xbf16>, vector<32x96xbf16>, vector<1x96xf32> -> vector<1x96xf32>
    %c0_36 = arith.constant 0 : index
    %c0_37 = arith.constant 0 : index
    %47 = vector.load %arg12[%c0_36, %c0_37] : memref<1x96xf32, #tpu.memory_space<vmem>>, vector<1x96xf32>
    %48 = arith.addf %46, %47 : vector<1x96xf32>
    %49 = vector.extract_strided_slice %44 {offsets = [0, 0], sizes = [1, 32], strides = [1, 1]} : vector<1x96xf32> to vector<1x32xf32>
    %50 = vector.extract_strided_slice %48 {offsets = [0, 0], sizes = [1, 32], strides = [1, 1]} : vector<1x96xf32> to vector<1x32xf32>
    %51 = arith.addf %49, %50 : vector<1x32xf32>
    %52 = arith.negf %51 : vector<1x32xf32>
    %53 = math.exp %52 : vector<1x32xf32>
    %cst_38 = arith.constant 1.000000e+00 : f32
    %54 = vector.broadcast %cst_38 : f32 to vector<1x32xf32>
    %55 = arith.addf %54, %53 : vector<1x32xf32>
    %56 = arith.divf %54, %55 : vector<1x32xf32>
    %57 = vector.extract_strided_slice %44 {offsets = [0, 32], sizes = [1, 32], strides = [1, 1]} : vector<1x96xf32> to vector<1x32xf32>
    %58 = vector.extract_strided_slice %48 {offsets = [0, 32], sizes = [1, 32], strides = [1, 1]} : vector<1x96xf32> to vector<1x32xf32>
    %59 = arith.addf %57, %58 : vector<1x32xf32>
    %60 = arith.negf %59 : vector<1x32xf32>
    %61 = math.exp %60 : vector<1x32xf32>
    %cst_39 = arith.constant 1.000000e+00 : f32
    %62 = vector.broadcast %cst_39 : f32 to vector<1x32xf32>
    %63 = arith.addf %62, %61 : vector<1x32xf32>
    %64 = arith.divf %62, %63 : vector<1x32xf32>
    %65 = vector.extract_strided_slice %44 {offsets = [0, 64], sizes = [1, 32], strides = [1, 1]} : vector<1x96xf32> to vector<1x32xf32>
    %66 = vector.extract_strided_slice %48 {offsets = [0, 64], sizes = [1, 32], strides = [1, 1]} : vector<1x96xf32> to vector<1x32xf32>
    %67 = arith.mulf %56, %66 : vector<1x32xf32>
    %68 = arith.addf %65, %67 : vector<1x32xf32>
    %69 = math.tanh %68 : vector<1x32xf32>
    %cst_40 = arith.constant 1.000000e+00 : f32
    %70 = vector.broadcast %cst_40 : f32 to vector<1x32xf32>
    %71 = arith.subf %70, %64 : vector<1x32xf32>
    %72 = arith.mulf %71, %69 : vector<1x32xf32>
    %73 = arith.mulf %64, %5 : vector<1x32xf32>
    %74 = arith.addf %72, %73 : vector<1x32xf32>
    %c0_41 = arith.constant 0 : index
    %c0_42 = arith.constant 0 : index
    %75 = vector.load %arg18[%c0_41, %c0_42] : memref<1x32xf32, #tpu.memory_space<vmem>>, vector<1x32xf32>
    tpu.vector_store %arg18[%c0_41, %c0_42], %74 {strides = array<i32>} : memref<1x32xf32, #tpu.memory_space<vmem>>, vector<1x32xf32>,
    %c0_43 = arith.constant 0 : index
    %c0_44 = arith.constant 0 : index
    %76 = vector.load %arg17[%c0_43, %c0_44] : memref<1x32xf32, #tpu.memory_space<vmem>>, vector<1x32xf32>
    tpu.vector_store %arg17[%c0_43, %c0_44], %74 {strides = array<i32>} : memref<1x32xf32, #tpu.memory_space<vmem>>, vector<1x32xf32>,
    %77 = arith.truncf %74 : vector<1x32xf32> to vector<1x32xbf16>
    %c0_45 = arith.constant 0 : index
    %c0_46 = arith.constant 0 : index
    %78 = vector.load %arg13[%c0_45, %c0_46] : memref<32x64xbf16, #tpu.memory_space<vmem>>, vector<32x64xbf16>
    %cst_47 = arith.constant dense<0.000000e+00> : vector<1x64xf32>
    %79 = tpu.matmul %77, %78, %cst_47 {dimension_numbers = #tpu.dot_dimension_numbers<[1], [0], [0], [1], [0, 0, 1, 1], [], []>} : vector<1x32xbf16>, vector<32x64xbf16>, vector<1x64xf32> -> vector<1x64xf32>
    %c0_48 = arith.constant 0 : index
    %c0_49 = arith.constant 0 : index
    %80 = vector.load %arg14[%c0_48, %c0_49] : memref<1x64xf32, #tpu.memory_space<vmem>>, vector<1x64xf32>
    %81 = arith.addf %79, %80 : vector<1x64xf32>
    %cst_50 = arith.constant dense<0xFF800000> : vector<1xf32>
    %82 = vector.multi_reduction <maximumf>, %81, %cst_50 [1] : vector<1x64xf32> to vector<1xf32>
    %83 = vector.shape_cast %82 : vector<1xf32> to vector<1x1xf32>
    %84 = vector.broadcast %83 : vector<1x1xf32> to vector<1x64xf32>
    %85 = arith.subf %81, %84 : vector<1x64xf32>
    %86 = math.exp %85 : vector<1x64xf32>
    %cst_51 = arith.constant dense<0.000000e+00> : vector<1xf32>
    %87 = vector.multi_reduction <add>, %86, %cst_51 [1] : vector<1x64xf32> to vector<1xf32>
    %88 = vector.shape_cast %87 : vector<1xf32> to vector<1x1xf32>
    %89 = math.log %88 : vector<1x1xf32>
    %90 = vector.broadcast %83 : vector<1x1xf32> to vector<1x64xf32>
    %91 = arith.subf %81, %90 : vector<1x64xf32>
    %92 = vector.broadcast %89 : vector<1x1xf32> to vector<1x64xf32>
    %93 = arith.subf %91, %92 : vector<1x64xf32>
    %c0_52 = arith.constant 0 : index
    %c0_53 = arith.constant 0 : index
    %c0_54 = arith.constant 0 : index
    %94 = vector.load %arg15[%c0_52, %c0_53, %c0_54] : memref<1x1x64xf32, #tpu.memory_space<vmem>>, vector<1x1x64xf32>
    %95 = vector.shape_cast %94 : vector<1x1x64xf32> to vector<1x64xf32>
    %96 = vector.shape_cast %93 : vector<1x64xf32> to vector<1x1x64xf32>
    tpu.vector_store %arg15[%c0_52, %c0_53, %c0_54], %96 {strides = array<i32>} : memref<1x1x64xf32, #tpu.memory_space<vmem>>, vector<1x1x64xf32>,
    return
  }
  func.func @transform_0(%arg0: i32, %arg1: memref<1xi32, #tpu.memory_space<smem>>) -> (i32, i32, i32) {
    %0 = arith.index_cast %arg0 : i32 to index
    %1 = memref.load %arg1[%0] : memref<1xi32, #tpu.memory_space<smem>>
    %c0_i32 = arith.constant 0 : i32
    %c0_i32_0 = arith.constant 0 : i32
    %c0_i32_1 = arith.constant 0 : i32
    return %1, %c0_i32, %c0_i32_0 : i32, i32, i32
  }
  func.func @transform_1(%arg0: i32, %arg1: memref<1xi32, #tpu.memory_space<smem>>) -> (i32, i32) {
    %c0_i32 = arith.constant 0 : i32
    %c0_i32_0 = arith.constant 0 : i32
    %c0_i32_1 = arith.constant 0 : i32
    return %c0_i32, %c0_i32_0 : i32, i32
  }
  func.func @transform_2(%arg0: i32, %arg1: memref<1xi32, #tpu.memory_space<smem>>) -> (i32, i32) {
    %c0_i32 = arith.constant 0 : i32
    %c0_i32_0 = arith.constant 0 : i32
    %c0_i32_1 = arith.constant 0 : i32
    return %c0_i32, %c0_i32_0 : i32, i32
  }
  func.func @transform_3(%arg0: i32, %arg1: memref<1xi32, #tpu.memory_space<smem>>) -> (i32, i32) {
    %c0_i32 = arith.constant 0 : i32
    %c0_i32_0 = arith.constant 0 : i32
    %c0_i32_1 = arith.constant 0 : i32
    return %c0_i32, %c0_i32_0 : i32, i32
  }
  func.func @transform_4(%arg0: i32, %arg1: memref<1xi32, #tpu.memory_space<smem>>) -> (i32, i32) {
    %c0_i32 = arith.constant 0 : i32
    %c0_i32_0 = arith.constant 0 : i32
    %c0_i32_1 = arith.constant 0 : i32
    return %c0_i32, %c0_i32_0 : i32, i32
  }
  func.func @transform_5(%arg0: i32, %arg1: memref<1xi32, #tpu.memory_space<smem>>) -> (i32, i32) {
    %c0_i32 = arith.constant 0 : i32
    %c0_i32_0 = arith.constant 0 : i32
    %c0_i32_1 = arith.constant 0 : i32
    return %c0_i32, %c0_i32_0 : i32, i32
  }
  func.func @transform_6(%arg0: i32, %arg1: memref<1xi32, #tpu.memory_space<smem>>) -> (i32, i32) {
    %c0_i32 = arith.constant 0 : i32
    %c0_i32_0 = arith.constant 0 : i32
    %c0_i32_1 = arith.constant 0 : i32
    return %c0_i32, %c0_i32_0 : i32, i32
  }
  func.func @transform_7(%arg0: i32, %arg1: memref<1xi32, #tpu.memory_space<smem>>) -> (i32, i32) {
    %c0_i32 = arith.constant 0 : i32
    %c0_i32_0 = arith.constant 0 : i32
    %c0_i32_1 = arith.constant 0 : i32
    return %c0_i32, %c0_i32_0 : i32, i32
  }
  func.func @transform_8(%arg0: i32, %arg1: memref<1xi32, #tpu.memory_space<smem>>) -> (i32, i32) {
    %c0_i32 = arith.constant 0 : i32
    %c0_i32_0 = arith.constant 0 : i32
    %c0_i32_1 = arith.constant 0 : i32
    return %c0_i32, %c0_i32_0 : i32, i32
  }
  func.func @transform_9(%arg0: i32, %arg1: memref<1xi32, #tpu.memory_space<smem>>) -> (i32, i32) {
    %c0_i32 = arith.constant 0 : i32
    %c0_i32_0 = arith.constant 0 : i32
    %c0_i32_1 = arith.constant 0 : i32
    return %c0_i32, %c0_i32_0 : i32, i32
  }
  func.func @transform_10(%arg0: i32, %arg1: memref<1xi32, #tpu.memory_space<smem>>) -> (i32, i32) {
    %c0_i32 = arith.constant 0 : i32
    %c0_i32_0 = arith.constant 0 : i32
    %c0_i32_1 = arith.constant 0 : i32
    return %c0_i32, %c0_i32_0 : i32, i32
  }
  func.func @transform_11(%arg0: i32, %arg1: memref<1xi32, #tpu.memory_space<smem>>) -> (i32, i32) {
    %c0_i32 = arith.constant 0 : i32
    %c0_i32_0 = arith.constant 0 : i32
    %c0_i32_1 = arith.constant 0 : i32
    return %c0_i32, %c0_i32_0 : i32, i32
  }
  func.func @transform_12(%arg0: i32, %arg1: memref<1xi32, #tpu.memory_space<smem>>) -> (i32, i32) {
    %c0_i32 = arith.constant 0 : i32
    %c0_i32_0 = arith.constant 0 : i32
    %c0_i32_1 = arith.constant 0 : i32
    return %c0_i32, %c0_i32_0 : i32, i32
  }
  func.func @transform_13(%arg0: i32, %arg1: memref<1xi32, #tpu.memory_space<smem>>) -> (i32, i32, i32) {
    %c0_i32 = arith.constant 0 : i32
    %c0_i32_0 = arith.constant 0 : i32
    %c0_i32_1 = arith.constant 0 : i32
    return %arg0, %c0_i32, %c0_i32_0 : i32, i32, i32
  }
  func.func @transform_14(%arg0: i32, %arg1: memref<1xi32, #tpu.memory_space<smem>>) -> (i32, i32, i32) {
    %c0_i32 = arith.constant 0 : i32
    %c0_i32_0 = arith.constant 0 : i32
    %c0_i32_1 = arith.constant 0 : i32
    return %arg0, %c0_i32, %c0_i32_0 : i32, i32, i32
  }
  func.func @transform_15(%arg0: i32, %arg1: memref<1xi32, #tpu.memory_space<smem>>) -> (i32, i32) {
    %c0_i32 = arith.constant 0 : i32
    %c0_i32_0 = arith.constant 0 : i32
    %c0_i32_1 = arith.constant 0 : i32
    return %c0_i32, %c0_i32_0 : i32, i32
  }
}

</mosaic_0001>

<llo_original>
// kernel: tpu_custom_call.1
$region0: #{tpu_custom_call.1}
  #allocation0 [shape = 'u32[]', space=smem, size = 0x4, offset = 0x4, fixed_abs, tag = 'smem constant byte address 0x4 - core index']
  #allocation1 [shape = 'u32[144,128]{1,0:T(1,128)}', space=vmem, size = 0x12000, scoped, tag = 'internal scratch']
  #allocation2 [shape = 'f32[1,32]{1,0:T(1,128)}', space=vmem, size = 0x200, scoped, tag = 'scratch operand']
  #allocation3 [shape = 's32[1]{0}', space=sflag, size = 0x4, scoped, tag = 'scoped memory for tpu_custom_call.1']
  #allocation4 [shape = 's32[1]{0:T(128)S(6)}', space=smem, size = 0x200, scoped, tag = 'prefetched SMEM operand 0']
  %s0 = inlined_call_operand.<no memory space> [shape: s32[1], index: 0, kind: input, shape index: {}]
  %s1 = inlined_call_operand.vmem [shape: bf16[64,1,32], index: 1, kind: input, shape index: {}]
  %s2 = inlined_call_operand.vmem [shape: f32[1,32], index: 2, kind: input, shape index: {}]
  %s3 = inlined_call_operand.vmem [shape: bf16[128,32], index: 3, kind: input, shape index: {}]
  %s4 = inlined_call_operand.vmem [shape: bf16[64,128], index: 4, kind: input, shape index: {}]
  %s5 = inlined_call_operand.vmem [shape: f32[1,128], index: 5, kind: input, shape index: {}]
  %s6 = inlined_call_operand.vmem [shape: bf16[64,32], index: 6, kind: input, shape index: {}]
  %s7 = inlined_call_operand.vmem [shape: f32[1,32], index: 7, kind: input, shape index: {}]
  %s8 = inlined_call_operand.vmem [shape: bf16[32,96], index: 8, kind: input, shape index: {}]
  %s9 = inlined_call_operand.vmem [shape: f32[1,96], index: 9, kind: input, shape index: {}]
  %s10 = inlined_call_operand.vmem [shape: bf16[32,96], index: 10, kind: input, shape index: {}]
  %s11 = inlined_call_operand.vmem [shape: f32[1,96], index: 11, kind: input, shape index: {}]
  %s12 = inlined_call_operand.vmem [shape: bf16[32,64], index: 12, kind: input, shape index: {}]
  %s13 = inlined_call_operand.vmem [shape: f32[1,64], index: 13, kind: input, shape index: {}]
  %s14 = inlined_call_operand.hbm [shape: f32[1,1,64], index: 14, kind: output, shape index: {0}]
  %s15 = inlined_call_operand.hbm [shape: f32[1,1,128], index: 15, kind: output, shape index: {1}]
  %s16 = inlined_call_operand.hbm [shape: f32[1,32], index: 16, kind: output, shape index: {2}]
  %17 = xla_tuple %s14, %s15, %s16
  %s18 = sld [smem:[#allocation0]]
  $region82: #{tpu_custom_call.1} parent=0
    _
  %s20 = ssub.s32 1, %s18
  %s21 = scalar_select 0, %s20, %s18
  %22 = sst [smem:[#allocation4]] %s0
  $region1: #{tpu_custom_call.1} parent=0
    #allocation5 [shape = 'u8[512]{0}', space=vmem, size = 0x400, scoped, tag = 'output window, operand 0, single buffered']
    #allocation6 [shape = 's32[1]{0}', space=sflag, size = 0x4, scoped, tag = 'scoped memory for tpu_custom_call.1']
    #allocation7 [shape = 'u8[512]{0}', space=vmem, size = 0x400, scoped, tag = 'output window, operand 1, single buffered']
    #allocation8 [shape = 's32[1]{0}', space=sflag, size = 0x4, scoped, tag = 'scoped memory for tpu_custom_call.1']
    #allocation9 [shape = 'u8[512]{0}', space=vmem, size = 0x400, scoped, tag = 'output window, operand 2, single buffered']
    %23 = vsyncpa [#allocation6], 0
    %24 = vsyncpa [#allocation8], 0
    // Predicated region
    $region2: #{tpu_custom_call.1} parent=1 // pred_check
      _
    $region3: #{tpu_custom_call.1} parent=1 // pred_check_branch
      %26 = sbr.rel (0) target = $region5
    $region4: #{tpu_custom_call.1} parent=1 // pred_region
      %s27 = sld [smem:[#allocation4]]
      %p28 = scmp.lt.s32.totalorder %s27, 63
      %s29 = scalar_select %p28, %s27, 63
      %s30 = scalar_lea.vmem %s1, %s29
      %s31 = sld [smem:[#allocation4]]
    $region5: #{tpu_custom_call.1} parent=1 // pred_fallthru
      _
    // Predicated region
    $region6: #{tpu_custom_call.1} parent=1 // pred_check
      _
    $region7: #{tpu_custom_call.1} parent=1 // pred_check_branch
      %33 = sbr.rel (0) target = $region9
    $region8: #{tpu_custom_call.1} parent=1 // pred_region
      _
    $region9: #{tpu_custom_call.1} parent=1 // pred_fallthru
      _
    // Predicated region
    $region10: #{tpu_custom_call.1} parent=1 // pred_check
      _
    $region11: #{tpu_custom_call.1} parent=1 // pred_check_branch
      %35 = sbr.rel (0) target = $region13
    $region12: #{tpu_custom_call.1} parent=1 // pred_region
      _
    $region13: #{tpu_custom_call.1} parent=1 // pred_fallthru
      _
    // Predicated region
    $region14: #{tpu_custom_call.1} parent=1 // pred_check
      _
    $region15: #{tpu_custom_call.1} parent=1 // pred_check_branch
      %37 = sbr.rel (0) target = $region17
    $region16: #{tpu_custom_call.1} parent=1 // pred_region
      _
    $region17: #{tpu_custom_call.1} parent=1 // pred_fallthru
      _
    // Predicated region
    $region18: #{tpu_custom_call.1} parent=1 // pred_check
      _
    $region19: #{tpu_custom_call.1} parent=1 // pred_check_branch
      %39 = sbr.rel (0) target = $region21
    $region20: #{tpu_custom_call.1} parent=1 // pred_region
      _
    $region21: #{tpu_custom_call.1} parent=1 // pred_fallthru
      _
    // Predicated region
    $region22: #{tpu_custom_call.1} parent=1 // pred_check
      _
    $region23: #{tpu_custom_call.1} parent=1 // pred_check_branch
      %41 = sbr.rel (0) target = $region25
    $region24: #{tpu_custom_call.1} parent=1 // pred_region
      _
    $region25: #{tpu_custom_call.1} parent=1 // pred_fallthru
      _
    // Predicated region
    $region26: #{tpu_custom_call.1} parent=1 // pred_check
      _
    $region27: #{tpu_custom_call.1} parent=1 // pred_check_branch
      %43 = sbr.rel (0) target = $region29
    $region28: #{tpu_custom_call.1} parent=1 // pred_region
      _
    $region29: #{tpu_custom_call.1} parent=1 // pred_fallthru
      _
    // Predicated region
    $region30: #{tpu_custom_call.1} parent=1 // pred_check
      _
    $region31: #{tpu_custom_call.1} parent=1 // pred_check_branch
      %45 = sbr.rel (0) target = $region33
    $region32: #{tpu_custom_call.1} parent=1 // pred_region
      _
    $region33: #{tpu_custom_call.1} parent=1 // pred_fallthru
      _
    // Predicated region
    $region34: #{tpu_custom_call.1} parent=1 // pred_check
      _
    $region35: #{tpu_custom_call.1} parent=1 // pred_check_branch
      %47 = sbr.rel (0) target = $region37
    $region36: #{tpu_custom_call.1} parent=1 // pred_region
      _
    $region37: #{tpu_custom_call.1} parent=1 // pred_fallthru
      _
    // Predicated region
    $region38: #{tpu_custom_call.1} parent=1 // pred_check
      _
    $region39: #{tpu_custom_call.1} parent=1 // pred_check_branch
      %49 = sbr.rel (0) target = $region41
    $region40: #{tpu_custom_call.1} parent=1 // pred_region
      _
    $region41: #{tpu_custom_call.1} parent=1 // pred_fallthru
      _
    // Predicated region
    $region42: #{tpu_custom_call.1} parent=1 // pred_check
      _
    $region43: #{tpu_custom_call.1} parent=1 // pred_check_branch
      %51 = sbr.rel (0) target = $region45
    $region44: #{tpu_custom_call.1} parent=1 // pred_region
      _
    $region45: #{tpu_custom_call.1} parent=1 // pred_fallthru
      _
    // Predicated region
    $region46: #{tpu_custom_call.1} parent=1 // pred_check
      _
    $region47: #{tpu_custom_call.1} parent=1 // pred_check_branch
      %53 = sbr.rel (0) target = $region49
    $region48: #{tpu_custom_call.1} parent=1 // pred_region
      _
    $region49: #{tpu_custom_call.1} parent=1 // pred_fallthru
      _
    // Predicated region
    $region50: #{tpu_custom_call.1} parent=1 // pred_check
      _
    $region51: #{tpu_custom_call.1} parent=1 // pred_check_branch
      %55 = sbr.rel (0) target = $region53
    $region52: #{tpu_custom_call.1} parent=1 // pred_region
      _
    $region53: #{tpu_custom_call.1} parent=1 // pred_fallthru
      _
    %s56 = sld [smem:[#allocation4]]
    %p57 = scmp.lt.s32.totalorder %s56, 63
    %s58 = scalar_select %p57, %s56, 63
    %s59 = scalar_lea.vmem %s1, %s58
    %s60 = sld [smem:[#allocation4]]
    %p61 = scmp.lt.s32.totalorder %s60, 63
    %s62 = scalar_select %p61, %s60, 63
    %s63 = scalar_lea.vmem %s1, %s62
    %s64 = sld [smem:[#allocation4]]
    %p66 = scmp.eq.s32.totalorder 0, 0
    // Predicated region
    $region54: #{tpu_custom_call.1} parent=1 // pred_check
      %p67 = pneg %p66
    $region55: #{tpu_custom_call.1} parent=1 // pred_check_branch
      %69 = sbr.rel (%p67) target = $region57
    $region56: #{tpu_custom_call.1} parent=1 // pred_region
      %v70 = vld [vmem:[%s2] sm:$0x1]
      %vm71 = vcmask 253952
      %72 = vst.msk [vmem:[#allocation2] sm:$0x1] %vm71, %v70
    $region57: #{tpu_custom_call.1} parent=1 // pred_fallthru
      _
    %v73 = vld [vmem:[%s63] sm:$0x1]
    %v74 = vld [vmem:[#allocation2] sm:$0x1]
    %v75 = vpack.c.bf16 %v74, %v74
    %v76 = vld [vmem:[%s4] sm:$0xf]
    %v77 = vld [vmem:[%s4 + $0x4] sm:$0xf]
    %v78 = vld [vmem:[%s4 + $0x8] sm:$0xf]
    %v79 = vld [vmem:[%s4 + $0xc] sm:$0xf]
    %v80 = vld [vmem:[%s4 + $0x10] sm:$0xf]
    %v81 = vld [vmem:[%s4 + $0x14] sm:$0xf]
    %v82 = vld [vmem:[%s4 + $0x18] sm:$0xf]
    %v83 = vld [vmem:[%s4 + $0x1c] sm:$0xf]
    %v88 = vunpack.c.l.b16 %v80
    %v89 = vunpack.c.l.b16 %v81
    %v90 = vunpack.c.l.b16 %v82
    %v91 = vunpack.c.l.b16 %v83
    %v92 = vpack.c.b16 %v89, %v88
    %v93 = vpack.c.b16 %v91, %v90
    %vm96 = vcmask 261120
    %v98 = vsel %vm96, %v75, 0
    %100 = vmatprep.subr.bf16.mxu0 0
    %101 = vmatpush1.bf16.msra.mxu0 %v92
    %102 = vmatprep.subr.bf16.mxu0 0
    %103 = vmatpush1.bf16.msra.mxu0 %v93
    %104 = vmatprep.subr.bf16.mxu0 0
    %105 = vmatpush1.bf16.msra.mxu0 0
    %106 = vmatprep.subr.bf16.mxu0 0
    %107 = vmatpush1.bf16.msra.mxu0 0
    %108 = vmatprep.subr.bf16.mxu0 0
    %109 = vmatpush1.bf16.msra.mxu0 0
    %110 = vmatprep.subr.bf16.mxu0 0
    %111 = vmatpush1.bf16.msra.mxu0 0
    %112 = vmatprep.subr.bf16.mxu0 0
    %113 = vmatpush1.bf16.msra.mxu0 0
    %114 = vmatprep.subr.bf16.mxu0 0
    %115 = vmatpush1.bf16.msra.mxu0 0
    %116 = vmatprep.subr.bf16.mxu0 0
    %117 = vmatpush1.bf16.msra.mxu0 0
    %118 = vmatprep.subr.bf16.mxu0 0
    %119 = vmatpush1.bf16.msra.mxu0 0
    %120 = vmatprep.subr.bf16.mxu0 0
    %121 = vmatpush1.bf16.msra.mxu0 0
    %122 = vmatprep.subr.bf16.mxu0 0
    %123 = vmatpush1.bf16.msra.mxu0 0
    %124 = vmatprep.subr.bf16.mxu0 0
    %125 = vmatpush1.bf16.msra.mxu0 0
    %126 = vmatprep.subr.bf16.mxu0 0
    %127 = vmatpush1.bf16.msra.mxu0 0
    %128 = vmatprep.subr.bf16.mxu0 0
    %129 = vmatpush1.bf16.msra.mxu0 0
    %130 = vmatprep.subr.bf16.mxu0 0
    %131 = vmatpush1.bf16.msra.mxu0 0
    %132 = vmatprep.mubr.bf16.mxu0 0
    %133 = vmatmul.mubr.bf16.gmra.mrb[0].mxu0 %v98
    %v134 = vpop.f32.mrb[0].mxu0
    %v135 = vadd.f32 0.0, %v134
    %v136 = vpop.f32.mrb[0].mxu0
    %v137 = vpop.f32.mrb[0].mxu0
    %v138 = vpop.f32.mrb[0].mxu0
    %139 = vdwg.mxu0
    %v144 = vunpack.c.l.b16 %v76
    %v145 = vunpack.c.l.b16 %v77
    %v146 = vunpack.c.l.b16 %v78
    %v147 = vunpack.c.l.b16 %v79
    %v148 = vpack.c.b16 %v145, %v144
    %v149 = vpack.c.b16 %v147, %v146
    %v153 = vsel %vm96, %v73, 0
    %155 = vmatprep.subr.bf16.mxu0 0
    %156 = vmatpush1.bf16.msra.mxu0 %v148
    %157 = vmatprep.subr.bf16.mxu0 0
    %158 = vmatpush1.bf16.msra.mxu0 %v149
    %159 = vmatprep.subr.bf16.mxu0 0
    %160 = vmatpush1.bf16.msra.mxu0 0
    %161 = vmatprep.subr.bf16.mxu0 0
    %162 = vmatpush1.bf16.msra.mxu0 0
    %163 = vmatprep.subr.bf16.mxu0 0
    %164 = vmatpush1.bf16.msra.mxu0 0
    %165 = vmatprep.subr.bf16.mxu0 0
    %166 = vmatpush1.bf16.msra.mxu0 0
    %167 = vmatprep.subr.bf16.mxu0 0
    %168 = vmatpush1.bf16.msra.mxu0 0
    %169 = vmatprep.subr.bf16.mxu0 0
    %170 = vmatpush1.bf16.msra.mxu0 0
    %171 = vmatprep.subr.bf16.mxu0 0
    %172 = vmatpush1.bf16.msra.mxu0 0
    %173 = vmatprep.subr.bf16.mxu0 0
    %174 = vmatpush1.bf16.msra.mxu0 0
    %175 = vmatprep.subr.bf16.mxu0 0
    %176 = vmatpush1.bf16.msra.mxu0 0
    %177 = vmatprep.subr.bf16.mxu0 0
    %178 = vmatpush1.bf16.msra.mxu0 0
    %179 = vmatprep.subr.bf16.mxu0 0
    %180 = vmatpush1.bf16.msra.mxu0 0
    %181 = vmatprep.subr.bf16.mxu0 0
    %182 = vmatpush1.bf16.msra.mxu0 0
    %183 = vmatprep.subr.bf16.mxu0 0
    %184 = vmatpush1.bf16.msra.mxu0 0
    %185 = vmatprep.subr.bf16.mxu0 0
    %186 = vmatpush1.bf16.msra.mxu0 0
    %187 = vmatprep.mubr.bf16.mxu0 0
    %188 = vmatmul.mubr.bf16.gmra.mrb[0].mxu0 %v153
    %v189 = vpop.f32.mrb[0].mxu0
    %v190 = vadd.f32 %v135, %v189
    %v191 = vpop.f32.mrb[0].mxu0
    %v192 = vpop.f32.mrb[0].mxu0
    %v193 = vpop.f32.mrb[0].mxu0
    %194 = vdwg.mxu0
    %v195 = vld [vmem:[%s5] sm:$0x1]
    %v196 = vadd.f32 %v190, %v195
    %vm197 = vcmask 1040384
    %v198 = vsel %vm197, %v196, -inf
    %199 = vmax.xlane.f32.xlu0 %v198
    %v200 = vpop.xlane.xlu0 %199
    %v201 = vsub.f32 %v196, %v200
    %v202 = vmul.f32 %v201, 1.442695
    %v203 = vpow.pop %v202
    %v204 = vsel %vm197, %v203, 0.0
    %205 = vadd.xlane.f32.xlu0 %v204
    %v206 = vpop.xlane.xlu0 %205
    %v207 = vrcp.pop %v206
    %v208 = vmul.f32 %v203, %v207
    %209 = vst [vmem:[#allocation7] sm:$0x1] %v208
    %v210 = vpack.c.bf16 %v208, %v208
    %v211 = vld [vmem:[%s3] sm:$0xf]
    %v212 = vld [vmem:[%s3 + $0x4] sm:$0xf]
    %v213 = vld [vmem:[%s3 + $0x8] sm:$0xf]
    %v214 = vld [vmem:[%s3 + $0xc] sm:$0xf]
    %v215 = vld [vmem:[%s3 + $0x10] sm:$0xf]
    %v216 = vld [vmem:[%s3 + $0x14] sm:$0xf]
    %v217 = vld [vmem:[%s3 + $0x18] sm:$0xf]
    %v218 = vld [vmem:[%s3 + $0x1c] sm:$0xf]
    %v219 = vld [vmem:[%s3 + $0x20] sm:$0xf]
    %v220 = vld [vmem:[%s3 + $0x24] sm:$0xf]
    %v221 = vld [vmem:[%s3 + $0x28] sm:$0xf]
    %v222 = vld [vmem:[%s3 + $0x2c] sm:$0xf]
    %v223 = vld [vmem:[%s3 + $0x30] sm:$0xf]
    %v224 = vld [vmem:[%s3 + $0x34] sm:$0xf]
    %v225 = vld [vmem:[%s3 + $0x38] sm:$0xf]
    %v226 = vld [vmem:[%s3 + $0x3c] sm:$0xf]
    %v243 = vunpack.c.l.b16 %v211
    %v244 = vunpack.c.l.b16 %v212
    %v245 = vunpack.c.l.b16 %v213
    %v246 = vunpack.c.l.b16 %v214
    %v247 = vunpack.c.l.b16 %v215
    %v248 = vunpack.c.l.b16 %v216
    %v249 = vunpack.c.l.b16 %v217
    %v250 = vunpack.c.l.b16 %v218
    %v251 = vunpack.c.l.b16 %v219
    %v252 = vunpack.c.l.b16 %v220
    %v253 = vunpack.c.l.b16 %v221
    %v254 = vunpack.c.l.b16 %v222
    %v255 = vunpack.c.l.b16 %v223
    %v256 = vunpack.c.l.b16 %v224
    %v257 = vunpack.c.l.b16 %v225
    %v258 = vunpack.c.l.b16 %v226
    %v259 = vpack.c.b16 %v244, %v243
    %v260 = vpack.c.b16 %v246, %v245
    %v261 = vpack.c.b16 %v248, %v247
    %v262 = vpack.c.b16 %v250, %v249
    %v263 = vpack.c.b16 %v252, %v251
    %v264 = vpack.c.b16 %v254, %v253
    %v265 = vpack.c.b16 %v256, %v255
    %v266 = vpack.c.b16 %v258, %v257
    %275 = vmatprep.subr.bf16.mxu0 0
    %276 = vmatpush1.bf16.msra.mxu0 %v259
    %277 = vmatprep.subr.bf16.mxu0 0
    %278 = vmatpush1.bf16.msra.mxu0 %v260
    %279 = vmatprep.subr.bf16.mxu0 0
    %280 = vmatpush1.bf16.msra.mxu0 %v261
    %281 = vmatprep.subr.bf16.mxu0 0
    %282 = vmatpush1.bf16.msra.mxu0 %v262
    %283 = vmatprep.subr.bf16.mxu0 0
    %284 = vmatpush1.bf16.msra.mxu0 %v263
    %285 = vmatprep.subr.bf16.mxu0 0
    %286 = vmatpush1.bf16.msra.mxu0 %v264
    %287 = vmatprep.subr.bf16.mxu0 0
    %288 = vmatpush1.bf16.msra.mxu0 %v265
    %289 = vmatprep.subr.bf16.mxu0 0
    %290 = vmatpush1.bf16.msra.mxu0 %v266
    %291 = vmatprep.subr.bf16.mxu0 0
    %292 = vmatpush1.bf16.msra.mxu0 0
    %293 = vmatprep.subr.bf16.mxu0 0
    %294 = vmatpush1.bf16.msra.mxu0 0
    %295 = vmatprep.subr.bf16.mxu0 0
    %296 = vmatpush1.bf16.msra.mxu0 0
    %297 = vmatprep.subr.bf16.mxu0 0
    %298 = vmatpush1.bf16.msra.mxu0 0
    %299 = vmatprep.subr.bf16.mxu0 0
    %300 = vmatpush1.bf16.msra.mxu0 0
    %301 = vmatprep.subr.bf16.mxu0 0
    %302 = vmatpush1.bf16.msra.mxu0 0
    %303 = vmatprep.subr.bf16.mxu0 0
    %304 = vmatpush1.bf16.msra.mxu0 0
    %305 = vmatprep.subr.bf16.mxu0 0
    %306 = vmatpush1.bf16.msra.mxu0 0
    %307 = vmatprep.mubr.bf16.mxu0 0
    %308 = vmatmul.mubr.bf16.gmra.mrb[0].mxu0 %v210
    %v309 = vpop.f32.mrb[0].mxu0
    %v310 = vadd.f32 0.0, %v309
    %v311 = vpop.f32.mrb[0].mxu0
    %v312 = vpop.f32.mrb[0].mxu0
    %v313 = vpop.f32.mrb[0].mxu0
    %314 = vdwg.mxu0
    %v315 = vld [vmem:[%s6] sm:$0xf]
    %v316 = vld [vmem:[%s6 + $0x4] sm:$0xf]
    %v317 = vld [vmem:[%s6 + $0x8] sm:$0xf]
    %v318 = vld [vmem:[%s6 + $0xc] sm:$0xf]
    %v319 = vpack.c.bf16 %v310, %v310
    %v320 = vld [vmem:[%s6 + $0x10] sm:$0xf]
    %v321 = vld [vmem:[%s6 + $0x14] sm:$0xf]
    %v322 = vld [vmem:[%s6 + $0x18] sm:$0xf]
    %v323 = vld [vmem:[%s6 + $0x1c] sm:$0xf]
    %v328 = vunpack.c.l.b16 %v320
    %v329 = vunpack.c.l.b16 %v321
    %v330 = vunpack.c.l.b16 %v322
    %v331 = vunpack.c.l.b16 %v323
    %v332 = vpack.c.b16 %v329, %v328
    %v333 = vpack.c.b16 %v331, %v330
    %v337 = vsel %vm96, %v319, 0
    %339 = vmatprep.subr.bf16.mxu0 0
    %340 = vmatpush1.bf16.msra.mxu0 %v332
    %341 = vmatprep.subr.bf16.mxu0 0
    %342 = vmatpush1.bf16.msra.mxu0 %v333
    %343 = vmatprep.subr.bf16.mxu0 0
    %344 = vmatpush1.bf16.msra.mxu0 0
    %345 = vmatprep.subr.bf16.mxu0 0
    %346 = vmatpush1.bf16.msra.mxu0 0
    %347 = vmatprep.subr.bf16.mxu0 0
    %348 = vmatpush1.bf16.msra.mxu0 0
    %349 = vmatprep.subr.bf16.mxu0 0
    %350 = vmatpush1.bf16.msra.mxu0 0
    %351 = vmatprep.subr.bf16.mxu0 0
    %352 = vmatpush1.bf16.msra.mxu0 0
    %353 = vmatprep.subr.bf16.mxu0 0
    %354 = vmatpush1.bf16.msra.mxu0 0
    %355 = vmatprep.subr.bf16.mxu0 0
    %356 = vmatpush1.bf16.msra.mxu0 0
    %357 = vmatprep.subr.bf16.mxu0 0
    %358 = vmatpush1.bf16.msra.mxu0 0
    %359 = vmatprep.subr.bf16.mxu0 0
    %360 = vmatpush1.bf16.msra.mxu0 0
    %361 = vmatprep.subr.bf16.mxu0 0
    %362 = vmatpush1.bf16.msra.mxu0 0
    %363 = vmatprep.subr.bf16.mxu0 0
    %364 = vmatpush1.bf16.msra.mxu0 0
    %365 = vmatprep.subr.bf16.mxu0 0
    %366 = vmatpush1.bf16.msra.mxu0 0
    %367 = vmatprep.subr.bf16.mxu0 0
    %368 = vmatpush1.bf16.msra.mxu0 0
    %369 = vmatprep.subr.bf16.mxu0 0
    %370 = vmatpush1.bf16.msra.mxu0 0
    %371 = vmatprep.mubr.bf16.mxu0 0
    %372 = vmatmul.mubr.bf16.gmra.mrb[0].mxu0 %v337
    %v373 = vpop.f32.mrb[0].mxu0
    %v374 = vadd.f32 0.0, %v373
    %v375 = vpop.f32.mrb[0].mxu0
    %v376 = vpop.f32.mrb[0].mxu0
    %v377 = vpop.f32.mrb[0].mxu0
    %378 = vdwg.mxu0
    %v383 = vunpack.c.l.b16 %v315
    %v384 = vunpack.c.l.b16 %v316
    %v385 = vunpack.c.l.b16 %v317
    %v386 = vunpack.c.l.b16 %v318
    %v387 = vpack.c.b16 %v384, %v383
    %v388 = vpack.c.b16 %v386, %v385
    %391 = vmatprep.subr.bf16.mxu0 0
    %392 = vmatpush1.bf16.msra.mxu0 %v387
    %393 = vmatprep.subr.bf16.mxu0 0
    %394 = vmatpush1.bf16.msra.mxu0 %v388
    %395 = vmatprep.subr.bf16.mxu0 0
    %396 = vmatpush1.bf16.msra.mxu0 0
    %397 = vmatprep.subr.bf16.mxu0 0
    %398 = vmatpush1.bf16.msra.mxu0 0
    %399 = vmatprep.subr.bf16.mxu0 0
    %400 = vmatpush1.bf16.msra.mxu0 0
    %401 = vmatprep.subr.bf16.mxu0 0
    %402 = vmatpush1.bf16.msra.mxu0 0
    %403 = vmatprep.subr.bf16.mxu0 0
    %404 = vmatpush1.bf16.msra.mxu0 0
    %405 = vmatprep.subr.bf16.mxu0 0
    %406 = vmatpush1.bf16.msra.mxu0 0
    %407 = vmatprep.subr.bf16.mxu0 0
    %408 = vmatpush1.bf16.msra.mxu0 0
    %409 = vmatprep.subr.bf16.mxu0 0
    %410 = vmatpush1.bf16.msra.mxu0 0
    %411 = vmatprep.subr.bf16.mxu0 0
    %412 = vmatpush1.bf16.msra.mxu0 0
    %413 = vmatprep.subr.bf16.mxu0 0
    %414 = vmatpush1.bf16.msra.mxu0 0
    %415 = vmatprep.subr.bf16.mxu0 0
    %416 = vmatpush1.bf16.msra.mxu0 0
    %417 = vmatprep.subr.bf16.mxu0 0
    %418 = vmatpush1.bf16.msra.mxu0 0
    %419 = vmatprep.subr.bf16.mxu0 0
    %420 = vmatpush1.bf16.msra.mxu0 0
    %421 = vmatprep.subr.bf16.mxu0 0
    %422 = vmatpush1.bf16.msra.mxu0 0
    %423 = vmatprep.mubr.bf16.mxu0 0
    %424 = vmatmul.mubr.bf16.gmra.mrb[0].mxu0 %v153
    %v425 = vpop.f32.mrb[0].mxu0
    %v426 = vadd.f32 %v374, %v425
    %v427 = vpop.f32.mrb[0].mxu0
    %v428 = vpop.f32.mrb[0].mxu0
    %v429 = vpop.f32.mrb[0].mxu0
    %430 = vdwg.mxu0
    %v431 = vld [vmem:[%s7] sm:$0x1]
    %v432 = vadd.f32 %v426, %v431
    %v433 = vmax.f32 %v432, 0.0
    %v434 = vpack.c.bf16 %v433, %v433
    %v435 = vld [vmem:[%s8] sm:$0xf]
    %v436 = vld [vmem:[%s8 + $0x4] sm:$0xf]
    %v437 = vld [vmem:[%s8 + $0x8] sm:$0xf]
    %v438 = vld [vmem:[%s8 + $0xc] sm:$0xf]
    %v439 = vld [vmem:[%s9] sm:$0x1]
    %v444 = vunpack.c.l.b16 %v435
    %v445 = vunpack.c.l.b16 %v436
    %v446 = vunpack.c.l.b16 %v437
    %v447 = vunpack.c.l.b16 %v438
    %v448 = vpack.c.b16 %v445, %v444
    %v449 = vpack.c.b16 %v447, %v446
    %v453 = vsel %vm96, %v434, 0
    %455 = vmatprep.subr.bf16.mxu0 0
    %456 = vmatpush1.bf16.msra.mxu0 %v448
    %457 = vmatprep.subr.bf16.mxu0 0
    %458 = vmatpush1.bf16.msra.mxu0 %v449
    %459 = vmatprep.subr.bf16.mxu0 0
    %460 = vmatpush1.bf16.msra.mxu0 0
    %461 = vmatprep.subr.bf16.mxu0 0
    %462 = vmatpush1.bf16.msra.mxu0 0
    %463 = vmatprep.subr.bf16.mxu0 0
    %464 = vmatpush1.bf16.msra.mxu0 0
    %465 = vmatprep.subr.bf16.mxu0 0
    %466 = vmatpush1.bf16.msra.mxu0 0
    %467 = vmatprep.subr.bf16.mxu0 0
    %468 = vmatpush1.bf16.msra.mxu0 0
    %469 = vmatprep.subr.bf16.mxu0 0
    %470 = vmatpush1.bf16.msra.mxu0 0
    %471 = vmatprep.subr.bf16.mxu0 0
    %472 = vmatpush1.bf16.msra.mxu0 0
    %473 = vmatprep.subr.bf16.mxu0 0
    %474 = vmatpush1.bf16.msra.mxu0 0
    %475 = vmatprep.subr.bf16.mxu0 0
    %476 = vmatpush1.bf16.msra.mxu0 0
    %477 = vmatprep.subr.bf16.mxu0 0
    %478 = vmatpush1.bf16.msra.mxu0 0
    %479 = vmatprep.subr.bf16.mxu0 0
    %480 = vmatpush1.bf16.msra.mxu0 0
    %481 = vmatprep.subr.bf16.mxu0 0
    %482 = vmatpush1.bf16.msra.mxu0 0
    %483 = vmatprep.subr.bf16.mxu0 0
    %484 = vmatpush1.bf16.msra.mxu0 0
    %485 = vmatprep.subr.bf16.mxu0 0
    %486 = vmatpush1.bf16.msra.mxu0 0
    %487 = vmatprep.mubr.bf16.mxu0 0
    %488 = vmatmul.mubr.bf16.gmra.mrb[0].mxu0 %v453
    %v489 = vpop.f32.mrb[0].mxu0
    %v490 = vadd.f32 %v439, %v489
    %v491 = vpop.f32.mrb[0].mxu0
    %v492 = vpop.f32.mrb[0].mxu0
    %v493 = vpop.f32.mrb[0].mxu0
    %494 = vdwg.mxu0
    %v495 = vld [vmem:[%s10] sm:$0xf]
    %v496 = vld [vmem:[%s10 + $0x4] sm:$0xf]
    %v497 = vld [vmem:[%s10 + $0x8] sm:$0xf]
    %v498 = vld [vmem:[%s10 + $0xc] sm:$0xf]
    %v499 = vld [vmem:[%s11] sm:$0x1]
    %v504 = vunpack.c.l.b16 %v495
    %v505 = vunpack.c.l.b16 %v496
    %v506 = vunpack.c.l.b16 %v497
    %v507 = vunpack.c.l.b16 %v498
    %v508 = vpack.c.b16 %v505, %v504
    %v509 = vpack.c.b16 %v507, %v506
    %512 = vmatprep.subr.bf16.mxu0 0
    %513 = vmatpush1.bf16.msra.mxu0 %v508
    %514 = vmatprep.subr.bf16.mxu0 0
    %515 = vmatpush1.bf16.msra.mxu0 %v509
    %516 = vmatprep.subr.bf16.mxu0 0
    %517 = vmatpush1.bf16.msra.mxu0 0
    %518 = vmatprep.subr.bf16.mxu0 0
    %519 = vmatpush1.bf16.msra.mxu0 0
    %520 = vmatprep.subr.bf16.mxu0 0
    %521 = vmatpush1.bf16.msra.mxu0 0
    %522 = vmatprep.subr.bf16.mxu0 0
    %523 = vmatpush1.bf16.msra.mxu0 0
    %524 = vmatprep.subr.bf16.mxu0 0
    %525 = vmatpush1.bf16.msra.mxu0 0
    %526 = vmatprep.subr.bf16.mxu0 0
    %527 = vmatpush1.bf16.msra.mxu0 0
    %528 = vmatprep.subr.bf16.mxu0 0
    %529 = vmatpush1.bf16.msra.mxu0 0
    %530 = vmatprep.subr.bf16.mxu0 0
    %531 = vmatpush1.bf16.msra.mxu0 0
    %532 = vmatprep.subr.bf16.mxu0 0
    %533 = vmatpush1.bf16.msra.mxu0 0
    %534 = vmatprep.subr.bf16.mxu0 0
    %535 = vmatpush1.bf16.msra.mxu0 0
    %536 = vmatprep.subr.bf16.mxu0 0
    %537 = vmatpush1.bf16.msra.mxu0 0
    %538 = vmatprep.subr.bf16.mxu0 0
    %539 = vmatpush1.bf16.msra.mxu0 0
    %540 = vmatprep.subr.bf16.mxu0 0
    %541 = vmatpush1.bf16.msra.mxu0 0
    %542 = vmatprep.subr.bf16.mxu0 0
    %543 = vmatpush1.bf16.msra.mxu0 0
    %544 = vmatprep.mubr.bf16.mxu0 0
    %545 = vmatmul.mubr.bf16.gmra.mrb[0].mxu0 %v98
    %v546 = vpop.f32.mrb[0].mxu0
    %v547 = vadd.f32 %v499, %v546
    %v548 = vpop.f32.mrb[0].mxu0
    %v549 = vpop.f32.mrb[0].mxu0
    %v550 = vpop.f32.mrb[0].mxu0
    %551 = vdwg.mxu0
    %v552 = vadd.f32 %v490, %v547
    %v553 = vxor.u32 %v552, 2147483648
    %v554 = vmul.f32 %v553, 1.442695
    %v555 = vpow.pop %v554
    %v556 = vadd.f32 %v555, 1.0
    %v557 = vrcp.pop %v556
    %v558 = vmul.f32 1.0, %v557
    %560 = vrot.lane.b32.xlu0 %v547, 64
    %v561 = vpop.permute.xlu0 %560
    %v563 = vmul.f32 %v558, %v561
    %565 = vrot.lane.b32.xlu0 %v563, 64
    %v566 = vpop.permute.xlu0 %565
    %v568 = vadd.f32 %v490, %v566
    %v569 = vtanh.pop %v568
    %v570 = vsub.f32 1.0, %v558
    %572 = vrot.lane.b32.xlu0 %v569, 96
    %v573 = vpop.permute.xlu0 %572
    %v575 = vmul.f32 %v570, %v573
    %v577 = vlaneseq
    %v578 = vshrl.u32 %v577, 7
    %v579 = vsub.s32 0, %v578
    %v580 = vrot.slane %v74, %v579
    %581 = vrot.lane.b32.xlu0 %v580, 32
    %v582 = vpop.permute.xlu0 %581
    %v584 = vmul.f32 %v558, %v582
    %v585 = vadd.f32 %v575, %v584
    %587 = vrot.lane.b32.xlu0 %v585, 96
    %v588 = vpop.permute.xlu0 %587
    %vm590 = vcmask 253952
    %591 = vst.msk [vmem:[#allocation2] sm:$0x1] %vm590, %v588
    %592 = vst.msk [vmem:[#allocation9] sm:$0x1] %vm590, %v588
    %v593 = vpack.c.bf16 %v585, %v585
    %v594 = vld [vmem:[%s12] sm:$0xf]
    %v595 = vld [vmem:[%s12 + $0x4] sm:$0xf]
    %v596 = vld [vmem:[%s12 + $0x8] sm:$0xf]
    %v597 = vld [vmem:[%s12 + $0xc] sm:$0xf]
    %v598 = vld [vmem:[%s13] sm:$0x1]
    %600 = vrot.lane.b32.xlu0 %v593, 96
    %v601 = vpop.permute.xlu0 %600
    %v606 = vunpack.c.l.b16 %v594
    %v607 = vunpack.c.l.b16 %v595
    %v608 = vunpack.c.l.b16 %v596
    %v609 = vunpack.c.l.b16 %v597
    %v610 = vpack.c.b16 %v607, %v606
    %v611 = vpack.c.b16 %v609, %v608
    %v615 = vsel %vm96, %v601, 0
    %617 = vmatprep.subr.bf16.mxu0 0
    %618 = vmatpush1.bf16.msra.mxu0 %v610
    %619 = vmatprep.subr.bf16.mxu0 0
    %620 = vmatpush1.bf16.msra.mxu0 %v611
    %621 = vmatprep.subr.bf16.mxu0 0
    %622 = vmatpush1.bf16.msra.mxu0 0
    %623 = vmatprep.subr.bf16.mxu0 0
    %624 = vmatpush1.bf16.msra.mxu0 0
    %625 = vmatprep.subr.bf16.mxu0 0
    %626 = vmatpush1.bf16.msra.mxu0 0
    %627 = vmatprep.subr.bf16.mxu0 0
    %628 = vmatpush1.bf16.msra.mxu0 0
    %629 = vmatprep.subr.bf16.mxu0 0
    %630 = vmatpush1.bf16.msra.mxu0 0
    %631 = vmatprep.subr.bf16.mxu0 0
    %632 = vmatpush1.bf16.msra.mxu0 0
    %633 = vmatprep.subr.bf16.mxu0 0
    %634 = vmatpush1.bf16.msra.mxu0 0
    %635 = vmatprep.subr.bf16.mxu0 0
    %636 = vmatpush1.bf16.msra.mxu0 0
    %637 = vmatprep.subr.bf16.mxu0 0
    %638 = vmatpush1.bf16.msra.mxu0 0
    %639 = vmatprep.subr.bf16.mxu0 0
    %640 = vmatpush1.bf16.msra.mxu0 0
    %641 = vmatprep.subr.bf16.mxu0 0
    %642 = vmatpush1.bf16.msra.mxu0 0
    %643 = vmatprep.subr.bf16.mxu0 0
    %644 = vmatpush1.bf16.msra.mxu0 0
    %645 = vmatprep.subr.bf16.mxu0 0
    %646 = vmatpush1.bf16.msra.mxu0 0
    %647 = vmatprep.subr.bf16.mxu0 0
    %648 = vmatpush1.bf16.msra.mxu0 0
    %649 = vmatprep.mubr.bf16.mxu0 0
    %650 = vmatmul.mubr.bf16.gmra.mrb[0].mxu0 %v615
    %v651 = vpop.f32.mrb[0].mxu0
    %v652 = vadd.f32 %v598, %v651
    %v653 = vpop.f32.mrb[0].mxu0
    %v654 = vpop.f32.mrb[0].mxu0
    %v655 = vpop.f32.mrb[0].mxu0
    %656 = vdwg.mxu0
    %vm657 = vcmask 516096
    %v658 = vsel %vm657, %v652, -inf
    %659 = vmax.xlane.f32.xlu0 %v658
    %v660 = vpop.xlane.xlu0 %659
    %v661 = vsub.f32 %v652, %v660
    %v662 = vmul.f32 %v661, 1.442695
    %v663 = vpow.pop %v662
    %v664 = vsel %vm657, %v663, 0.0
    %665 = vadd.xlane.f32.xlu0 %v664
    %v666 = vpop.xlane.xlu0 %665
    %v667 = vlog2.pop %v666
    %v668 = vmul.f32 %v667, 0.6931472
    %v669 = vsub.f32 %v661, %v668
    %670 = vst.msk [vmem:[#allocation5] sm:$0x1] %vm657, %v669
    // Predicated region
    $region58: #{tpu_custom_call.1} parent=1 // pred_check
      _
    $region59: #{tpu_custom_call.1} parent=1 // pred_check_branch
      %672 = sbr.rel (0) target = $region61
    $region60: #{tpu_custom_call.1} parent=1 // pred_region
      %s674 = ssub.s32 16, 16
      %675 = vsyncadd [#allocation6], %s674
      %s677 = sshll.u32 [#allocation5], 4
      %s678 = int_to_ptr.vmem [resolvable:$true] %s677
      %680 = dma.vmem_to_hbm [thread:$0]  %s678, 16, %s14, [#allocation6]
    $region61: #{tpu_custom_call.1} parent=1 // pred_fallthru
      _
    // Predicated region
    $region62: #{tpu_custom_call.1} parent=1 // pred_check
      _
    $region63: #{tpu_custom_call.1} parent=1 // pred_check_branch
      %682 = sbr.rel (0) target = $region65
    $region64: #{tpu_custom_call.1} parent=1 // pred_region
      %s684 = ssub.s32 16, 16
      %685 = vsyncadd [#allocation8], %s684
      %s687 = sshll.u32 [#allocation7], 4
      %s688 = int_to_ptr.vmem [resolvable:$true] %s687
      %690 = dma.vmem_to_hbm [thread:$0]  %s688, 16, %s15, [#allocation8]
    $region65: #{tpu_custom_call.1} parent=1 // pred_fallthru
      _
    // Predicated region
    $region66: #{tpu_custom_call.1} parent=1 // pred_check
      _
    $region67: #{tpu_custom_call.1} parent=1 // pred_check_branch
      %692 = sbr.rel (0) target = $region69
    $region68: #{tpu_custom_call.1} parent=1 // pred_region
      %s694 = ssub.s32 16, 16
      %695 = vsyncadd [#allocation8], %s694
      %s697 = sshll.u32 [#allocation9], 4
      %s698 = int_to_ptr.vmem [resolvable:$true] %s697
      %700 = dma.vmem_to_hbm [thread:$0]  %s698, 16, %s16, [#allocation8]
    $region69: #{tpu_custom_call.1} parent=1 // pred_fallthru
      _
    // Predicated region
    $region70: #{tpu_custom_call.1} parent=1 // pred_check
      _
    $region71: #{tpu_custom_call.1} parent=1 // pred_check_branch
      %702 = sbr.rel (0) target = $region73
    $region72: #{tpu_custom_call.1} parent=1 // pred_region
      %703 = dma.done [#allocation6], 16
    $region73: #{tpu_custom_call.1} parent=1 // pred_fallthru
      _
    // Predicated region
    $region74: #{tpu_custom_call.1} parent=1 // pred_check
      _
    $region75: #{tpu_custom_call.1} parent=1 // pred_check_branch
      %705 = sbr.rel (0) target = $region77
    $region76: #{tpu_custom_call.1} parent=1 // pred_region
      %706 = dma.done [#allocation8], 16
    $region77: #{tpu_custom_call.1} parent=1 // pred_fallthru
      _
    // Predicated region
    $region78: #{tpu_custom_call.1} parent=1 // pred_check
      _
    $region79: #{tpu_custom_call.1} parent=1 // pred_check_branch
      %708 = sbr.rel (0) target = $region81
    $region80: #{tpu_custom_call.1} parent=1 // pred_region
      %709 = dma.done [#allocation8], 16
    $region81: #{tpu_custom_call.1} parent=1 // pred_fallthru
      _
    %710 = vsyncpa [#allocation6], 1
    %711 = vsyncpa [#allocation8], 1

</llo_original>
